<compile_context>
chip_gen: v6e
topology: v6e:2x2x1
jax: 0.10.0
libtpu: 0.0.40
codegen_flags: <defaults>
</compile_context>

<pallas_src>
import jax
import jax.numpy as jnp
from jax.experimental import pallas as pl
from jax.experimental.pallas import tpu as pltpu

STATE_SIZE = 8
K_PAD = 16                # fc1 contraction dim padded 8 -> 16 (bf16 min tile)
ACTION_SIZE = 4
H1, H2, H3 = 128, 64, 32
PAD = 128                 # lane width hidden features are padded to
LN_EPS = 1e-5             # PyTorch nn.LayerNorm default
TB_MAX = 2048             # max batch rows per grid step


def _round_up(n, m):
    return ((n + m - 1) // m) * m


# ----------------------------------------------------------------------------
# Kernel
# ----------------------------------------------------------------------------
def _ln_relu(h, gamma, beta, red, true_n):
    """LayerNorm over the first `true_n` lanes (stats via MXU), then ReLU.

    `red` is a 0/1 bf16 matrix whose rows < true_n are all ones, so
    (x @ red) holds the masked lane-sum broadcast into every output lane —
    the cross-lane reduction and the broadcast both happen on the MXU
    (f32 accumulation) instead of the XLU.

    Padded lanes of `h` are exactly zero and gamma/beta are zero there, so
    padded lanes stay zero after LN (LN3 additionally forces lane 32 to 1.0
    via beta; the masked statistics ignore that lane).
    """
    inv_n = 1.0 / float(true_n)
    mean = jnp.dot(h.astype(jnp.bfloat16), red,
                   preferred_element_type=jnp.float32) * inv_n
    c = h - mean                                   # f32, centered
    var = jnp.dot((c * c).astype(jnp.bfloat16), red,
                  preferred_element_type=jnp.float32) * inv_n
    y = c * jax.lax.rsqrt(var + LN_EPS) * gamma + beta
    return jnp.maximum(y, 0.0)


def dqn_kernel(x_ref, w1_ref, wstk_ref, wo_ref, vec_ref, o_ref):
    v = vec_ref[...]                               # (16, 128) f32 bias/gamma/beta pack
    x = x_ref[...].astype(jnp.bfloat16)            # (tb, 16)

    # fc1 -> ln1 -> relu   (true width 128)
    h = jnp.dot(x, w1_ref[...], preferred_element_type=jnp.float32) + v[0:1]
    h = _ln_relu(h, v[1:2], v[2:3], wstk_ref[2], H1)

    # fc2 -> ln2 -> relu   (true width 64, padded lanes stay 0)
    h = jnp.dot(h.astype(jnp.bfloat16), wstk_ref[0],
                preferred_element_type=jnp.float32) + v[3:4]
    h = _ln_relu(h, v[4:5], v[5:6], wstk_ref[3], H2)

    # fc3 -> ln3 -> relu   (true width 32; lane 32 forced to 1.0 -> bias feed)
    h = jnp.dot(h.astype(jnp.bfloat16), wstk_ref[1],
                preferred_element_type=jnp.float32) + v[6:7]
    h = _ln_relu(h, v[7:8], v[8:9], wstk_ref[4], H3)

    # output head (output bias folded into wo row 32); 16 B/row writeback.
    o = jnp.dot(h.astype(jnp.bfloat16), wo_ref[...],
                preferred_element_type=jnp.float32)
    o_ref[...] = o.astype(o_ref.dtype)


# ----------------------------------------------------------------------------
# Parameter handling
# ----------------------------------------------------------------------------
def init_params(key):
    """PyTorch-equivalent parameters (Linear weights stored transposed as
    (in_features, out_features)); all float32."""
    ks = jax.random.split(key, 8)

    def linear(kw, kb, fan_in, fan_out):
        bound = 1.0 / jnp.sqrt(fan_in)
        w = jax.random.uniform(kw, (fan_in, fan_out), jnp.float32, -bound, bound)
        b = jax.random.uniform(kb, (1, fan_out), jnp.float32, -bound, bound)
        return w, b

    w1, b1 = linear(ks[0], ks[1], STATE_SIZE, H1)
    w2, b2 = linear(ks[2], ks[3], H1, H2)
    w3, b3 = linear(ks[4], ks[5], H2, H3)
    wo, bo = linear(ks[6], ks[7], H3, ACTION_SIZE)

    return dict(
        w1=w1, b1=b1, g1=jnp.ones((1, H1), jnp.float32), be1=jnp.zeros((1, H1), jnp.float32),
        w2=w2, b2=b2, g2=jnp.ones((1, H2), jnp.float32), be2=jnp.zeros((1, H2), jnp.float32),
        w3=w3, b3=b3, g3=jnp.ones((1, H3), jnp.float32), be3=jnp.zeros((1, H3), jnp.float32),
        wo=wo, bo=bo,
    )


def prepare_kernel_params(params):
    """Pack the 15 PyTorch-layout f32 params into the 5 kernel operands."""
    def pad2(a, rows, cols):
        r, c = a.shape
        return jnp.pad(a, ((0, rows - r), (0, cols - c)))

    # Layer-1 weight: contraction dim padded 8 -> 16 (bf16 minimum tile).
    w1 = pad2(params["w1"], K_PAD, PAD).astype(jnp.bfloat16)          # (16, 128)

    # Masked reduction matrix: rows < true_n are all ones, so (x @ red)[m, j]
    # holds sum_{f < true_n} x[m, f] in every lane j.
    def red(true_n):
        return jnp.broadcast_to(
            (jnp.arange(PAD) < true_n)[:, None].astype(jnp.float32), (PAD, PAD))

    wstack = jnp.stack([
        pad2(params["w2"], PAD, PAD),      # (128,128), cols 64..127 zero
        pad2(params["w3"], PAD, PAD),      # (128,128), cols 32..127 zero
        red(H1), red(H2), red(H3),
    ]).astype(jnp.bfloat16)                # (5, 128, 128)

    # Head weight with the output bias folded into row H3 (=32); LN3 forces
    # h3[:, 32] == 1.0 (see vec pack below), so the matmul adds the bias.
    wo = jnp.zeros((PAD, ACTION_SIZE), jnp.float32)
    wo = wo.at[:H3, :].set(params["wo"])
    wo = wo.at[H3, :].set(params["bo"][0])
    wo = wo.astype(jnp.bfloat16)           # (128, 4)

    # Rows 0..8: b1,g1,be1,b2,g2,be2,b3,g3,be3 padded to 128 lanes (zeros in
    # padded lanes keep those lanes zero after LN); be3 lane 32 set to 1.0.
    be3 = pad2(params["be3"], 1, PAD).at[0, H3].set(1.0)
    rows = [pad2(params[k], 1, PAD) for k in
            ("b1", "g1", "be1", "b2", "g2", "be2", "b3", "g3")] + [be3]
    vec = jnp.concatenate(rows + [jnp.zeros((16 - len(rows), PAD), jnp.float32)])

    return dict(w1=w1, wstack=wstack, wo=wo, vec=vec)


# ----------------------------------------------------------------------------
# Wrapper
# ----------------------------------------------------------------------------
def _choose_tile(B, tb_max):
    """Batch tile: single tile for small B; otherwise >= 2 grid steps so the
    "parallel" batch axis spans both TensorCores on v7x."""
    if B <= 256:
        tb = _round_up(max(B, 1), 8)
        return tb, tb
    tb = min(tb_max, _round_up(pl.cdiv(B, 2), 128))
    return tb, _round_up(B, tb)


def dqn_forward(x, kparams, tb_max=TB_MAX):
    """x: (B, 1, state_size) or (B, state_size) f32. Returns (B, ACTION_SIZE) f32."""
    if x.ndim == 3:
        x = jnp.squeeze(x, axis=1)          # mirrors x.squeeze(1)
    B = x.shape[0]
    tb, b_pad = _choose_tile(B, tb_max)

    # Pad the batch to the tile grid and the state dim 8 -> 16 (bf16 min K
    # tile).  Padded rows produce finite relu(beta) garbage and are sliced
    # off; padded K columns hit zero rows of w1.
    x = jnp.pad(x, ((0, b_pad - B), (0, K_PAD - x.shape[1])))

    args = (x, kparams["w1"], kparams["wstack"], kparams["wo"], kparams["vec"])

    in_specs = [
        pl.BlockSpec((tb, K_PAD), lambda i: (i, 0)),          # x: batch-tiled
        pl.BlockSpec((K_PAD, PAD), lambda i: (0, 0)),         # w1: VMEM-resident
        pl.BlockSpec((5, PAD, PAD), lambda i: (0, 0, 0)),     # w2/w3 + LN reduce mats
        pl.BlockSpec((PAD, ACTION_SIZE), lambda i: (0, 0)),   # head weight (+bias row)
        pl.BlockSpec((16, PAD), lambda i: (0, 0)),            # bias/gamma/beta pack
    ]
    out_specs = pl.BlockSpec((tb, ACTION_SIZE), lambda i: (i, 0))

    param_bytes = sum(int(a.size) * a.dtype.itemsize for a in args[1:])
    cost = pl.CostEstimate(
        # 3 layer matmuls + head + 6 LN-reduction matmuls, all 128-wide.
        flops=2 * b_pad * PAD * (K_PAD + 8 * PAD + ACTION_SIZE),
        transcendentals=3 * b_pad,                      # one rsqrt per LN row
        bytes_accessed=b_pad * (K_PAD + ACTION_SIZE) * 4 + param_bytes,
    )

    out = pl.pallas_call(
        dqn_kernel,
        out_shape=jax.ShapeDtypeStruct((b_pad, ACTION_SIZE), jnp.float32),
        grid=(b_pad // tb,),
        in_specs=in_specs,
        out_specs=out_specs,
        compiler_params=pltpu.CompilerParams(
            dimension_semantics=("parallel",),
            # At tb=2048: x/out blocks ~0.4 MiB double-buffered, ~0.2 MiB of
            # resident params, a few MiB of f32 intermediates -> well under
            # 32 MiB on every chip (incl. v7x's 64 MiB physical VMEM).
            vmem_limit_bytes=32 * 1024 * 1024,
        ),
        cost_estimate=cost,
    )(*args)

    return out[:B]


# ----------------------------------------------------------------------------
# Pure-JAX reference (matches the PyTorch module, f32 everywhere)
# ----------------------------------------------------------------------------
def _layernorm_ref(x, gamma, beta):
    mu = jnp.mean(x, axis=-1, keepdims=True)
    var = jnp.mean((x - mu) ** 2, axis=-1, keepdims=True)
    return (x - mu) * jax.lax.rsqrt(var + LN_EPS) * gamma + beta


def dqn_reference(x, params):
    if x.ndim == 3:
        x = jnp.squeeze(x, axis=1)
    h = x @ params["w1"] + params["b1"]
    h = jnp.maximum(_layernorm_ref(h, params["g1"], params["be1"]), 0.0)
    h = h @ params["w2"] + params["b2"]
    h = jnp.maximum(_layernorm_ref(h, params["g2"], params["be2"]), 0.0)
    h = h @ params["w3"] + params["b3"]
    h = jnp.maximum(_layernorm_ref(h, params["g3"], params["be3"]), 0.0)
    return h @ params["wo"] + params["bo"]


if __name__ == "__main__":
    key = jax.random.PRNGKey(0)
    k_param, k_x, k_xb = jax.random.split(key, 3)

    params = init_params(k_param)
    kparams = prepare_kernel_params(params)

    # Primary check: module-shaped input (B, 1, state_size), single-tile path.
    x = jax.random.normal(k_x, (2, 1, STATE_SIZE), jnp.float32)
    out = jax.block_until_ready(dqn_forward(x, kparams))
    ref = dqn_reference(x, params)
    assert out.shape == (2, ACTION_SIZE)
    # bf16 matmul inputs (f32 accumulate / f32 LN math) -> loosened tolerance.
    assert jnp.allclose(out, ref, atol=6e-2, rtol=6e-2), (out, ref)

    # Secondary check: exercises the multi-step grid + padded-batch path.
    xb = jax.random.normal(k_xb, (260, STATE_SIZE), jnp.float32)
    outb = jax.block_until_ready(dqn_forward(xb, kparams))
    refb = dqn_reference(xb, params)
    assert outb.shape == (260, ACTION_SIZE)
    assert jnp.allclose(outb, refb, atol=6e-2, rtol=6e-2)

    print("KERNEL_OK")
</pallas_src>

<mosaic_0001>
module attributes {stable_mosaic.version = 11 : i64} {
  func.func @dqn_kernel(%arg0: i32, %arg1: memref<8x16xf32, #tpu.memory_space<vmem>>, %arg2: memref<16x128xbf16, #tpu.memory_space<vmem>>, %arg3: memref<5x128x128xbf16, #tpu.memory_space<vmem>>, %arg4: memref<128x4xbf16, #tpu.memory_space<vmem>>, %arg5: memref<16x128xf32, #tpu.memory_space<vmem>>, %arg6: memref<8x4xf32, #tpu.memory_space<vmem>>) attributes {dimension_semantics = [#tpu.dimension_semantics<parallel>], iteration_bounds = array<i64: 1>, scalar_prefetch = 0 : i64, scratch_operands = 0 : i64, tpu.core_type = #tpu.core_type<tc>, window_params = [{transform_indices = @transform_0, window_bounds = array<i64: 8, 16>}, {pipeline_mode = #tpu.pipeline_mode<synchronous>, transform_indices = @transform_1, window_bounds = array<i64: 16, 128>}, {pipeline_mode = #tpu.pipeline_mode<synchronous>, transform_indices = @transform_2, window_bounds = array<i64: 5, 128, 128>}, {pipeline_mode = #tpu.pipeline_mode<synchronous>, transform_indices = @transform_3, window_bounds = array<i64: 128, 4>}, {pipeline_mode = #tpu.pipeline_mode<synchronous>, transform_indices = @transform_4, window_bounds = array<i64: 16, 128>}, {transform_indices = @transform_5, window_bounds = array<i64: 8, 4>}]} {
    %c0 = arith.constant 0 : index
    %c0_0 = arith.constant 0 : index
    %0 = vector.load %arg5[%c0, %c0_0] : memref<16x128xf32, #tpu.memory_space<vmem>>, vector<16x128xf32>
    %c0_1 = arith.constant 0 : index
    %c0_2 = arith.constant 0 : index
    %1 = vector.load %arg1[%c0_1, %c0_2] : memref<8x16xf32, #tpu.memory_space<vmem>>, vector<8x16xf32>
    %2 = arith.truncf %1 : vector<8x16xf32> to vector<8x16xbf16>
    %c0_3 = arith.constant 0 : index
    %c0_4 = arith.constant 0 : index
    %3 = vector.load %arg2[%c0_3, %c0_4] : memref<16x128xbf16, #tpu.memory_space<vmem>>, vector<16x128xbf16>
    %cst = arith.constant dense<0.000000e+00> : vector<8x128xf32>
    %4 = tpu.matmul %2, %3, %cst {dimension_numbers = #tpu.dot_dimension_numbers<[1], [0], [0], [1], [0, 0, 1, 1], [], []>} : vector<8x16xbf16>, vector<16x128xbf16>, vector<8x128xf32> -> vector<8x128xf32>
    %5 = vector.extract_strided_slice %0 {offsets = [0, 0], sizes = [1, 128], strides = [1, 1]} : vector<16x128xf32> to vector<1x128xf32>
    %6 = vector.broadcast %5 : vector<1x128xf32> to vector<8x128xf32>
    %7 = arith.addf %4, %6 : vector<8x128xf32>
    %8 = vector.extract_strided_slice %0 {offsets = [1, 0], sizes = [1, 128], strides = [1, 1]} : vector<16x128xf32> to vector<1x128xf32>
    %9 = vector.extract_strided_slice %0 {offsets = [2, 0], sizes = [1, 128], strides = [1, 1]} : vector<16x128xf32> to vector<1x128xf32>
    %c2 = arith.constant 2 : index
    %c0_5 = arith.constant 0 : index
    %c0_6 = arith.constant 0 : index
    %10 = vector.load %arg3[%c2, %c0_5, %c0_6] : memref<5x128x128xbf16, #tpu.memory_space<vmem>>, vector<1x128x128xbf16>
    %11 = vector.shape_cast %10 : vector<1x128x128xbf16> to vector<128x128xbf16>
    %12 = arith.truncf %7 : vector<8x128xf32> to vector<8x128xbf16>
    %cst_7 = arith.constant dense<0.000000e+00> : vector<8x128xf32>
    %13 = tpu.matmul %12, %11, %cst_7 {dimension_numbers = #tpu.dot_dimension_numbers<[1], [0], [0], [1], [0, 0, 1, 1], [], []>} : vector<8x128xbf16>, vector<128x128xbf16>, vector<8x128xf32> -> vector<8x128xf32>
    %cst_8 = arith.constant 7.812500e-03 : f32
    %14 = vector.broadcast %cst_8 : f32 to vector<8x128xf32>
    %15 = arith.mulf %13, %14 : vector<8x128xf32>
    %16 = arith.subf %7, %15 : vector<8x128xf32>
    %17 = arith.mulf %16, %16 : vector<8x128xf32>
    %18 = arith.truncf %17 : vector<8x128xf32> to vector<8x128xbf16>
    %cst_9 = arith.constant dense<0.000000e+00> : vector<8x128xf32>
    %19 = tpu.matmul %18, %11, %cst_9 {dimension_numbers = #tpu.dot_dimension_numbers<[1], [0], [0], [1], [0, 0, 1, 1], [], []>} : vector<8x128xbf16>, vector<128x128xbf16>, vector<8x128xf32> -> vector<8x128xf32>
    %cst_10 = arith.constant 7.812500e-03 : f32
    %20 = vector.broadcast %cst_10 : f32 to vector<8x128xf32>
    %21 = arith.mulf %19, %20 : vector<8x128xf32>
    %cst_11 = arith.constant 9.99999974E-6 : f32
    %22 = vector.broadcast %cst_11 : f32 to vector<8x128xf32>
    %23 = arith.addf %21, %22 : vector<8x128xf32>
    %24 = math.rsqrt %23 : vector<8x128xf32>
    %25 = arith.mulf %16, %24 : vector<8x128xf32>
    %26 = vector.broadcast %8 : vector<1x128xf32> to vector<8x128xf32>
    %27 = arith.mulf %25, %26 : vector<8x128xf32>
    %28 = vector.broadcast %9 : vector<1x128xf32> to vector<8x128xf32>
    %29 = arith.addf %27, %28 : vector<8x128xf32>
    %cst_12 = arith.constant 0.000000e+00 : f32
    %30 = vector.broadcast %cst_12 : f32 to vector<8x128xf32>
    %31 = arith.maximumf %29, %30 : vector<8x128xf32>
    %32 = arith.truncf %31 : vector<8x128xf32> to vector<8x128xbf16>
    %c0_13 = arith.constant 0 : index
    %c0_14 = arith.constant 0 : index
    %c0_15 = arith.constant 0 : index
    %33 = vector.load %arg3[%c0_13, %c0_14, %c0_15] : memref<5x128x128xbf16, #tpu.memory_space<vmem>>, vector<1x128x128xbf16>
    %34 = vector.shape_cast %33 : vector<1x128x128xbf16> to vector<128x128xbf16>
    %cst_16 = arith.constant dense<0.000000e+00> : vector<8x128xf32>
    %35 = tpu.matmul %32, %34, %cst_16 {dimension_numbers = #tpu.dot_dimension_numbers<[1], [0], [0], [1], [0, 0, 1, 1], [], []>} : vector<8x128xbf16>, vector<128x128xbf16>, vector<8x128xf32> -> vector<8x128xf32>
    %36 = vector.extract_strided_slice %0 {offsets = [3, 0], sizes = [1, 128], strides = [1, 1]} : vector<16x128xf32> to vector<1x128xf32>
    %37 = vector.broadcast %36 : vector<1x128xf32> to vector<8x128xf32>
    %38 = arith.addf %35, %37 : vector<8x128xf32>
    %39 = vector.extract_strided_slice %0 {offsets = [4, 0], sizes = [1, 128], strides = [1, 1]} : vector<16x128xf32> to vector<1x128xf32>
    %40 = vector.extract_strided_slice %0 {offsets = [5, 0], sizes = [1, 128], strides = [1, 1]} : vector<16x128xf32> to vector<1x128xf32>
    %c3 = arith.constant 3 : index
    %c0_17 = arith.constant 0 : index
    %c0_18 = arith.constant 0 : index
    %41 = vector.load %arg3[%c3, %c0_17, %c0_18] : memref<5x128x128xbf16, #tpu.memory_space<vmem>>, vector<1x128x128xbf16>
    %42 = vector.shape_cast %41 : vector<1x128x128xbf16> to vector<128x128xbf16>
    %43 = arith.truncf %38 : vector<8x128xf32> to vector<8x128xbf16>
    %cst_19 = arith.constant dense<0.000000e+00> : vector<8x128xf32>
    %44 = tpu.matmul %43, %42, %cst_19 {dimension_numbers = #tpu.dot_dimension_numbers<[1], [0], [0], [1], [0, 0, 1, 1], [], []>} : vector<8x128xbf16>, vector<128x128xbf16>, vector<8x128xf32> -> vector<8x128xf32>
    %cst_20 = arith.constant 1.562500e-02 : f32
    %45 = vector.broadcast %cst_20 : f32 to vector<8x128xf32>
    %46 = arith.mulf %44, %45 : vector<8x128xf32>
    %47 = arith.subf %38, %46 : vector<8x128xf32>
    %48 = arith.mulf %47, %47 : vector<8x128xf32>
    %49 = arith.truncf %48 : vector<8x128xf32> to vector<8x128xbf16>
    %cst_21 = arith.constant dense<0.000000e+00> : vector<8x128xf32>
    %50 = tpu.matmul %49, %42, %cst_21 {dimension_numbers = #tpu.dot_dimension_numbers<[1], [0], [0], [1], [0, 0, 1, 1], [], []>} : vector<8x128xbf16>, vector<128x128xbf16>, vector<8x128xf32> -> vector<8x128xf32>
    %cst_22 = arith.constant 1.562500e-02 : f32
    %51 = vector.broadcast %cst_22 : f32 to vector<8x128xf32>
    %52 = arith.mulf %50, %51 : vector<8x128xf32>
    %cst_23 = arith.constant 9.99999974E-6 : f32
    %53 = vector.broadcast %cst_23 : f32 to vector<8x128xf32>
    %54 = arith.addf %52, %53 : vector<8x128xf32>
    %55 = math.rsqrt %54 : vector<8x128xf32>
    %56 = arith.mulf %47, %55 : vector<8x128xf32>
    %57 = vector.broadcast %39 : vector<1x128xf32> to vector<8x128xf32>
    %58 = arith.mulf %56, %57 : vector<8x128xf32>
    %59 = vector.broadcast %40 : vector<1x128xf32> to vector<8x128xf32>
    %60 = arith.addf %58, %59 : vector<8x128xf32>
    %cst_24 = arith.constant 0.000000e+00 : f32
    %61 = vector.broadcast %cst_24 : f32 to vector<8x128xf32>
    %62 = arith.maximumf %60, %61 : vector<8x128xf32>
    %63 = arith.truncf %62 : vector<8x128xf32> to vector<8x128xbf16>
    %c1 = arith.constant 1 : index
    %c0_25 = arith.constant 0 : index
    %c0_26 = arith.constant 0 : index
    %64 = vector.load %arg3[%c1, %c0_25, %c0_26] : memref<5x128x128xbf16, #tpu.memory_space<vmem>>, vector<1x128x128xbf16>
    %65 = vector.shape_cast %64 : vector<1x128x128xbf16> to vector<128x128xbf16>
    %cst_27 = arith.constant dense<0.000000e+00> : vector<8x128xf32>
    %66 = tpu.matmul %63, %65, %cst_27 {dimension_numbers = #tpu.dot_dimension_numbers<[1], [0], [0], [1], [0, 0, 1, 1], [], []>} : vector<8x128xbf16>, vector<128x128xbf16>, vector<8x128xf32> -> vector<8x128xf32>
    %67 = vector.extract_strided_slice %0 {offsets = [6, 0], sizes = [1, 128], strides = [1, 1]} : vector<16x128xf32> to vector<1x128xf32>
    %68 = vector.broadcast %67 : vector<1x128xf32> to vector<8x128xf32>
    %69 = arith.addf %66, %68 : vector<8x128xf32>
    %70 = vector.extract_strided_slice %0 {offsets = [7, 0], sizes = [1, 128], strides = [1, 1]} : vector<16x128xf32> to vector<1x128xf32>
    %71 = vector.extract_strided_slice %0 {offsets = [8, 0], sizes = [1, 128], strides = [1, 1]} : vector<16x128xf32> to vector<1x128xf32>
    %c4 = arith.constant 4 : index
    %c0_28 = arith.constant 0 : index
    %c0_29 = arith.constant 0 : index
    %72 = vector.load %arg3[%c4, %c0_28, %c0_29] : memref<5x128x128xbf16, #tpu.memory_space<vmem>>, vector<1x128x128xbf16>
    %73 = vector.shape_cast %72 : vector<1x128x128xbf16> to vector<128x128xbf16>
    %74 = arith.truncf %69 : vector<8x128xf32> to vector<8x128xbf16>
    %cst_30 = arith.constant dense<0.000000e+00> : vector<8x128xf32>
    %75 = tpu.matmul %74, %73, %cst_30 {dimension_numbers = #tpu.dot_dimension_numbers<[1], [0], [0], [1], [0, 0, 1, 1], [], []>} : vector<8x128xbf16>, vector<128x128xbf16>, vector<8x128xf32> -> vector<8x128xf32>
    %cst_31 = arith.constant 3.125000e-02 : f32
    %76 = vector.broadcast %cst_31 : f32 to vector<8x128xf32>
    %77 = arith.mulf %75, %76 : vector<8x128xf32>
    %78 = arith.subf %69, %77 : vector<8x128xf32>
    %79 = arith.mulf %78, %78 : vector<8x128xf32>
    %80 = arith.truncf %79 : vector<8x128xf32> to vector<8x128xbf16>
    %cst_32 = arith.constant dense<0.000000e+00> : vector<8x128xf32>
    %81 = tpu.matmul %80, %73, %cst_32 {dimension_numbers = #tpu.dot_dimension_numbers<[1], [0], [0], [1], [0, 0, 1, 1], [], []>} : vector<8x128xbf16>, vector<128x128xbf16>, vector<8x128xf32> -> vector<8x128xf32>
    %cst_33 = arith.constant 3.125000e-02 : f32
    %82 = vector.broadcast %cst_33 : f32 to vector<8x128xf32>
    %83 = arith.mulf %81, %82 : vector<8x128xf32>
    %cst_34 = arith.constant 9.99999974E-6 : f32
    %84 = vector.broadcast %cst_34 : f32 to vector<8x128xf32>
    %85 = arith.addf %83, %84 : vector<8x128xf32>
    %86 = math.rsqrt %85 : vector<8x128xf32>
    %87 = arith.mulf %78, %86 : vector<8x128xf32>
    %88 = vector.broadcast %70 : vector<1x128xf32> to vector<8x128xf32>
    %89 = arith.mulf %87, %88 : vector<8x128xf32>
    %90 = vector.broadcast %71 : vector<1x128xf32> to vector<8x128xf32>
    %91 = arith.addf %89, %90 : vector<8x128xf32>
    %cst_35 = arith.constant 0.000000e+00 : f32
    %92 = vector.broadcast %cst_35 : f32 to vector<8x128xf32>
    %93 = arith.maximumf %91, %92 : vector<8x128xf32>
    %94 = arith.truncf %93 : vector<8x128xf32> to vector<8x128xbf16>
    %c0_36 = arith.constant 0 : index
    %c0_37 = arith.constant 0 : index
    %95 = vector.load %arg4[%c0_36, %c0_37] : memref<128x4xbf16, #tpu.memory_space<vmem>>, vector<128x4xbf16>
    %cst_38 = arith.constant dense<0.000000e+00> : vector<8x4xf32>
    %96 = tpu.matmul %94, %95, %cst_38 {dimension_numbers = #tpu.dot_dimension_numbers<[1], [0], [0], [1], [0, 0, 1, 1], [], []>} : vector<8x128xbf16>, vector<128x4xbf16>, vector<8x4xf32> -> vector<8x4xf32>
    %c0_39 = arith.constant 0 : index
    %c0_40 = arith.constant 0 : index
    %97 = vector.load %arg6[%c0_39, %c0_40] : memref<8x4xf32, #tpu.memory_space<vmem>>, vector<8x4xf32>
    tpu.vector_store %arg6[%c0_39, %c0_40], %96 {strides = array<i32>} : memref<8x4xf32, #tpu.memory_space<vmem>>, vector<8x4xf32>,
    return
  }
  func.func @transform_0(%arg0: i32) -> (i32, i32) {
    %c0_i32 = arith.constant 0 : i32
    %c0_i32_0 = arith.constant 0 : i32
    return %arg0, %c0_i32 : i32, i32
  }
  func.func @transform_1(%arg0: i32) -> (i32, i32) {
    %c0_i32 = arith.constant 0 : i32
    %c0_i32_0 = arith.constant 0 : i32
    %c0_i32_1 = arith.constant 0 : i32
    return %c0_i32, %c0_i32_0 : i32, i32
  }
  func.func @transform_2(%arg0: i32) -> (i32, i32, i32) {
    %c0_i32 = arith.constant 0 : i32
    %c0_i32_0 = arith.constant 0 : i32
    %c0_i32_1 = arith.constant 0 : i32
    %c0_i32_2 = arith.constant 0 : i32
    return %c0_i32, %c0_i32_0, %c0_i32_1 : i32, i32, i32
  }
  func.func @transform_3(%arg0: i32) -> (i32, i32) {
    %c0_i32 = arith.constant 0 : i32
    %c0_i32_0 = arith.constant 0 : i32
    %c0_i32_1 = arith.constant 0 : i32
    return %c0_i32, %c0_i32_0 : i32, i32
  }
  func.func @transform_4(%arg0: i32) -> (i32, i32) {
    %c0_i32 = arith.constant 0 : i32
    %c0_i32_0 = arith.constant 0 : i32
    %c0_i32_1 = arith.constant 0 : i32
    return %c0_i32, %c0_i32_0 : i32, i32
  }
  func.func @transform_5(%arg0: i32) -> (i32, i32) {
    %c0_i32 = arith.constant 0 : i32
    %c0_i32_0 = arith.constant 0 : i32
    return %arg0, %c0_i32 : i32, i32
  }
}

</mosaic_0001>

<llo_original>
// kernel: tpu_custom_call.1
$region0: #{tpu_custom_call.1}
  #allocation0 [shape = 'u32[]', space=smem, size = 0x4, offset = 0x4, fixed_abs, tag = 'smem constant byte address 0x4 - core index']
  #allocation1 [shape = 'u32[144,128]{1,0:T(1,128)}', space=vmem, size = 0x12000, scoped, tag = 'internal scratch']
  %s0 = inlined_call_operand.vmem [shape: f32[8,16], index: 0, kind: input, shape index: {}]
  %s1 = inlined_call_operand.vmem [shape: bf16[16,128], index: 1, kind: input, shape index: {}]
  %s2 = inlined_call_operand.hbm [shape: bf16[5,128,128], index: 2, kind: input, shape index: {}]
  %s3 = inlined_call_operand.vmem [shape: bf16[128,4], index: 3, kind: input, shape index: {}]
  %s4 = inlined_call_operand.vmem [shape: f32[16,128], index: 4, kind: input, shape index: {}]
  %s5 = inlined_call_operand.vmem [shape: f32[8,4], index: 5, kind: output, shape index: {}]
  %s6 = sld [smem:[#allocation0]]
  $region34: #{tpu_custom_call.1} parent=0
    _
  %s8 = ssub.s32 1, %s6
  %s9 = scalar_select 0, %s8, %s6
  $region1: #{tpu_custom_call.1} parent=0
    #allocation2 [shape = 'u8[163840]{0}', space=vmem, size = 0x28000, scoped, tag = 'input window, operand 2, single buffered']
    #allocation3 [shape = 's32[1]{0}', space=sflag, size = 0x4, scoped, tag = 'scoped memory for tpu_custom_call.1']
    %10 = vsyncpa [#allocation3], 0
    // Predicated region
    $region2: #{tpu_custom_call.1} parent=1 // pred_check
      _
    $region3: #{tpu_custom_call.1} parent=1 // pred_check_branch
      %12 = sbr.rel (0) target = $region5
    $region4: #{tpu_custom_call.1} parent=1 // pred_region
      _
    $region5: #{tpu_custom_call.1} parent=1 // pred_fallthru
      _
    // Predicated region
    $region6: #{tpu_custom_call.1} parent=1 // pred_check
      _
    $region7: #{tpu_custom_call.1} parent=1 // pred_check_branch
      %14 = sbr.rel (0) target = $region9
    $region8: #{tpu_custom_call.1} parent=1 // pred_region
      _
    $region9: #{tpu_custom_call.1} parent=1 // pred_fallthru
      _
    // Predicated region
    $region10: #{tpu_custom_call.1} parent=1 // pred_check
      _
    $region11: #{tpu_custom_call.1} parent=1 // pred_check_branch
      %16 = sbr.rel (0) target = $region13
    $region12: #{tpu_custom_call.1} parent=1 // pred_region
      %s18 = ssub.s32 5120, 5120
      %19 = vsyncadd [#allocation3], %s18
      %s20 = sshll.u32 [#allocation2], 4
      %s21 = int_to_ptr.vmem [resolvable:$true] %s20
      %26 = dma.hbm_to_vmem [thread:$0]  %s2, 5120, %s21, [#allocation3], 64, 64, 4
    $region13: #{tpu_custom_call.1} parent=1 // pred_fallthru
      _
    // Predicated region
    $region14: #{tpu_custom_call.1} parent=1 // pred_check
      _
    $region15: #{tpu_custom_call.1} parent=1 // pred_check_branch
      %28 = sbr.rel (0) target = $region17
    $region16: #{tpu_custom_call.1} parent=1 // pred_region
      _
    $region17: #{tpu_custom_call.1} parent=1 // pred_fallthru
      _
    // Predicated region
    $region18: #{tpu_custom_call.1} parent=1 // pred_check
      _
    $region19: #{tpu_custom_call.1} parent=1 // pred_check_branch
      %30 = sbr.rel (0) target = $region21
    $region20: #{tpu_custom_call.1} parent=1 // pred_region
      _
    $region21: #{tpu_custom_call.1} parent=1 // pred_fallthru
      _
    // Predicated region
    $region22: #{tpu_custom_call.1} parent=1 // pred_check
      _
    $region23: #{tpu_custom_call.1} parent=1 // pred_check_branch
      %32 = sbr.rel (0) target = $region25
    $region24: #{tpu_custom_call.1} parent=1 // pred_region
      %33 = dma.done [#allocation3], 5120
    $region25: #{tpu_custom_call.1} parent=1 // pred_fallthru
      _
    %v35 = vld [vmem:[%s4] sm:$0xff]
    %v36 = vld [vmem:[%s4 + $0x8] sm:$0xff]
    %v37 = vld [vmem:[%s0] sm:$0xff]
    %v38 = vpack.c.bf16 %v37, %v37
    %v39 = vld [vmem:[%s1] sm:$0xf]
    %v40 = vld [vmem:[%s1 + $0x4] sm:$0xf]
    %v41 = vlaneseq
    %v42 = vshrl.u32 %v41, 7
    %v43 = vsub.s32 0, %v42
    %v44 = vrot.slane %v35, %v43
    %v47 = vunpack.c.l.b16 %v39
    %v48 = vunpack.c.l.b16 %v40
    %v49 = vpack.c.b16 %v48, %v47
    %vm51 = vcmask 130048
    %v53 = vsel %vm51, %v38, 0
    %55 = vmatprep.subr.bf16.mxu0 0
    %56 = vmatpush1.bf16.msra.mxu0 0
    %57 = vmatprep.subr.bf16.mxu0 0
    %58 = vmatpush1.bf16.msra.mxu0 0
    %59 = vmatprep.subr.bf16.mxu0 0
    %60 = vmatpush1.bf16.msra.mxu0 0
    %61 = vmatprep.subr.bf16.mxu0 0
    %62 = vmatpush1.bf16.msra.mxu0 0
    %63 = vmatprep.subr.bf16.mxu0 0
    %64 = vmatpush1.bf16.msra.mxu0 0
    %65 = vmatprep.subr.bf16.mxu0 0
    %66 = vmatpush1.bf16.msra.mxu0 0
    %67 = vmatprep.subr.bf16.mxu0 0
    %68 = vmatpush1.bf16.msra.mxu0 0
    %69 = vmatprep.subr.bf16.mxu0 0
    %70 = vmatpush1.bf16.msra.mxu0 %v49
    %71 = vmatprep.subr.bf16.mxu0 0
    %72 = vmatpush2.bf16.msra.mxu0 0
    %73 = vmatprep.subr.bf16.mxu0 0
    %74 = vmatpush2.bf16.msra.mxu0 0
    %75 = vmatprep.subr.bf16.mxu0 0
    %76 = vmatpush2.bf16.msra.mxu0 0
    %77 = vmatprep.subr.bf16.mxu0 0
    %78 = vmatpush2.bf16.msra.mxu0 0
    %79 = vmatprep.subr.bf16.mxu0 0
    %80 = vmatpush2.bf16.msra.mxu0 0
    %81 = vmatprep.subr.bf16.mxu0 0
    %82 = vmatpush2.bf16.msra.mxu0 0
    %83 = vmatprep.subr.bf16.mxu0 0
    %84 = vmatpush2.bf16.msra.mxu0 0
    %85 = vmatprep.subr.bf16.mxu0 0
    %86 = vmatpush2.bf16.msra.mxu0 0
    %87 = vmatprep.mubr.bf16.mxu0 0
    %88 = vmatmul.mubr.bf16.gmra.mxu0 %v53
    %v89 = vpop.f32.mrf.mxu0
    %v90 = vadd.f32 %v44, %v89
    %v91 = vpop.f32.mrf.mxu0
    %v92 = vpop.f32.mrf.mxu0
    %v93 = vpop.f32.mrf.mxu0
    %94 = vdwg.mxu0
    %s95 = scalar_lea.vmem [#allocation2], 128
    %v96 = vld [vmem:[%s95] sm:$0xf]
    %v97 = vld [vmem:[%s95 + $0x4] sm:$0xf]
    %v98 = vld [vmem:[%s95 + $0x8] sm:$0xf]
    %v99 = vld [vmem:[%s95 + $0xc] sm:$0xf]
    %v100 = vld [vmem:[%s95 + $0x10] sm:$0xf]
    %v101 = vld [vmem:[%s95 + $0x14] sm:$0xf]
    %v102 = vld [vmem:[%s95 + $0x18] sm:$0xf]
    %v103 = vld [vmem:[%s95 + $0x1c] sm:$0xf]
    %v104 = vld [vmem:[%s95 + $0x20] sm:$0xf]
    %v105 = vld [vmem:[%s95 + $0x24] sm:$0xf]
    %v106 = vld [vmem:[%s95 + $0x28] sm:$0xf]
    %v107 = vld [vmem:[%s95 + $0x2c] sm:$0xf]
    %v108 = vld [vmem:[%s95 + $0x30] sm:$0xf]
    %v109 = vld [vmem:[%s95 + $0x34] sm:$0xf]
    %v110 = vld [vmem:[%s95 + $0x38] sm:$0xf]
    %v111 = vld [vmem:[%s95 + $0x3c] sm:$0xf]
    %v112 = vpack.c.bf16 %v90, %v90
    %v129 = vunpack.c.l.b16 %v96
    %v130 = vunpack.c.l.b16 %v97
    %v131 = vunpack.c.l.b16 %v98
    %v132 = vunpack.c.l.b16 %v99
    %v133 = vunpack.c.l.b16 %v100
    %v134 = vunpack.c.l.b16 %v101
    %v135 = vunpack.c.l.b16 %v102
    %v136 = vunpack.c.l.b16 %v103
    %v137 = vunpack.c.l.b16 %v104
    %v138 = vunpack.c.l.b16 %v105
    %v139 = vunpack.c.l.b16 %v106
    %v140 = vunpack.c.l.b16 %v107
    %v141 = vunpack.c.l.b16 %v108
    %v142 = vunpack.c.l.b16 %v109
    %v143 = vunpack.c.l.b16 %v110
    %v144 = vunpack.c.l.b16 %v111
    %v145 = vpack.c.b16 %v130, %v129
    %v146 = vpack.c.b16 %v132, %v131
    %v147 = vpack.c.b16 %v134, %v133
    %v148 = vpack.c.b16 %v136, %v135
    %v149 = vpack.c.b16 %v138, %v137
    %v150 = vpack.c.b16 %v140, %v139
    %v151 = vpack.c.b16 %v142, %v141
    %v152 = vpack.c.b16 %v144, %v143
    %161 = vmatprep.subr.bf16.mxu0 0
    %162 = vmatpush1.bf16.msra.mxu0 %v152
    %163 = vmatprep.subr.bf16.mxu0 0
    %164 = vmatpush1.bf16.msra.mxu0 %v151
    %165 = vmatprep.subr.bf16.mxu0 0
    %166 = vmatpush1.bf16.msra.mxu0 %v150
    %167 = vmatprep.subr.bf16.mxu0 0
    %168 = vmatpush1.bf16.msra.mxu0 %v149
    %169 = vmatprep.subr.bf16.mxu0 0
    %170 = vmatpush1.bf16.msra.mxu0 %v148
    %171 = vmatprep.subr.bf16.mxu0 0
    %172 = vmatpush1.bf16.msra.mxu0 %v147
    %173 = vmatprep.subr.bf16.mxu0 0
    %174 = vmatpush1.bf16.msra.mxu0 %v146
    %175 = vmatprep.subr.bf16.mxu0 0
    %176 = vmatpush1.bf16.msra.mxu0 %v145
    %177 = vmatprep.subr.bf16.mxu0 0
    %178 = vmatpush2.bf16.msra.mxu0 0
    %179 = vmatprep.subr.bf16.mxu0 0
    %180 = vmatpush2.bf16.msra.mxu0 0
    %181 = vmatprep.subr.bf16.mxu0 0
    %182 = vmatpush2.bf16.msra.mxu0 0
    %183 = vmatprep.subr.bf16.mxu0 0
    %184 = vmatpush2.bf16.msra.mxu0 0
    %185 = vmatprep.subr.bf16.mxu0 0
    %186 = vmatpush2.bf16.msra.mxu0 0
    %187 = vmatprep.subr.bf16.mxu0 0
    %188 = vmatpush2.bf16.msra.mxu0 0
    %189 = vmatprep.subr.bf16.mxu0 0
    %190 = vmatpush2.bf16.msra.mxu0 0
    %191 = vmatprep.subr.bf16.mxu0 0
    %192 = vmatpush2.bf16.msra.mxu0 0
    %193 = vmatprep.mubr.bf16.mxu0 0
    %194 = vmatmul.mubr.bf16.gmra.mxu0 %v112
    %v195 = vpop.f32.mrf.mxu0
    %v196 = vadd.f32 0.0, %v195
    %v197 = vpop.f32.mrf.mxu0
    %v198 = vpop.f32.mrf.mxu0
    %v199 = vpop.f32.mrf.mxu0
    %200 = vdwg.mxu0
    %v201 = vmul.f32 %v196, 0.0078125
    %v202 = vsub.f32 %v90, %v201
    %v203 = vmul.f32 %v202, %v202
    %v204 = vpack.c.bf16 %v203, %v203
    %205 = vmatprep.subr.bf16.mxu0 0
    %206 = vmatpush1.bf16.msra.mxu0 %v152
    %207 = vmatprep.subr.bf16.mxu0 0
    %208 = vmatpush1.bf16.msra.mxu0 %v151
    %209 = vmatprep.subr.bf16.mxu0 0
    %210 = vmatpush1.bf16.msra.mxu0 %v150
    %211 = vmatprep.subr.bf16.mxu0 0
    %212 = vmatpush1.bf16.msra.mxu0 %v149
    %213 = vmatprep.subr.bf16.mxu0 0
    %214 = vmatpush1.bf16.msra.mxu0 %v148
    %215 = vmatprep.subr.bf16.mxu0 0
    %216 = vmatpush1.bf16.msra.mxu0 %v147
    %217 = vmatprep.subr.bf16.mxu0 0
    %218 = vmatpush1.bf16.msra.mxu0 %v146
    %219 = vmatprep.subr.bf16.mxu0 0
    %220 = vmatpush1.bf16.msra.mxu0 %v145
    %221 = vmatprep.subr.bf16.mxu0 0
    %222 = vmatpush2.bf16.msra.mxu0 0
    %223 = vmatprep.subr.bf16.mxu0 0
    %224 = vmatpush2.bf16.msra.mxu0 0
    %225 = vmatprep.subr.bf16.mxu0 0
    %226 = vmatpush2.bf16.msra.mxu0 0
    %227 = vmatprep.subr.bf16.mxu0 0
    %228 = vmatpush2.bf16.msra.mxu0 0
    %229 = vmatprep.subr.bf16.mxu0 0
    %230 = vmatpush2.bf16.msra.mxu0 0
    %231 = vmatprep.subr.bf16.mxu0 0
    %232 = vmatpush2.bf16.msra.mxu0 0
    %233 = vmatprep.subr.bf16.mxu0 0
    %234 = vmatpush2.bf16.msra.mxu0 0
    %235 = vmatprep.subr.bf16.mxu0 0
    %236 = vmatpush2.bf16.msra.mxu0 0
    %237 = vmatprep.mubr.bf16.mxu0 0
    %238 = vmatmul.mubr.bf16.gmra.mxu0 %v204
    %v239 = vpop.f32.mrf.mxu0
    %v240 = vadd.f32 0.0, %v239
    %v241 = vpop.f32.mrf.mxu0
    %v242 = vpop.f32.mrf.mxu0
    %v243 = vpop.f32.mrf.mxu0
    %244 = vdwg.mxu0
    %v245 = vmul.f32 %v240, 0.0078125
    %v246 = vadd.f32 %v245, 1e-05
    %v247 = vrsqrt.pop %v246
    %v248 = vmul.f32 %v202, %v247
    %v249 = vlaneseq
    %v250 = vshrl.u32 %v249, 7
    %v251 = vsub.s32 1, %v250
    %v252 = vrot.slane %v35, %v251
    %v253 = vmul.f32 %v248, %v252
    %v254 = vlaneseq
    %v255 = vshrl.u32 %v254, 7
    %v256 = vsub.s32 2, %v255
    %v257 = vrot.slane %v35, %v256
    %v258 = vadd.f32 %v253, %v257
    %v259 = vmax.f32 %v258, 0.0
    %v260 = vpack.c.bf16 %v259, %v259
    %v261 = vld [vmem:[#allocation2] sm:$0xf]
    %v262 = vld [vmem:[#allocation2 + $0x4] sm:$0xf]
    %v263 = vld [vmem:[#allocation2 + $0x8] sm:$0xf]
    %v264 = vld [vmem:[#allocation2 + $0xc] sm:$0xf]
    %v265 = vld [vmem:[#allocation2 + $0x10] sm:$0xf]
    %v266 = vld [vmem:[#allocation2 + $0x14] sm:$0xf]
    %v267 = vld [vmem:[#allocation2 + $0x18] sm:$0xf]
    %v268 = vld [vmem:[#allocation2 + $0x1c] sm:$0xf]
    %v269 = vld [vmem:[#allocation2 + $0x20] sm:$0xf]
    %v270 = vld [vmem:[#allocation2 + $0x24] sm:$0xf]
    %v271 = vld [vmem:[#allocation2 + $0x28] sm:$0xf]
    %v272 = vld [vmem:[#allocation2 + $0x2c] sm:$0xf]
    %v273 = vld [vmem:[#allocation2 + $0x30] sm:$0xf]
    %v274 = vld [vmem:[#allocation2 + $0x34] sm:$0xf]
    %v275 = vld [vmem:[#allocation2 + $0x38] sm:$0xf]
    %v276 = vld [vmem:[#allocation2 + $0x3c] sm:$0xf]
    %v277 = vlaneseq
    %v278 = vshrl.u32 %v277, 7
    %v279 = vsub.s32 3, %v278
    %v280 = vrot.slane %v35, %v279
    %v297 = vunpack.c.l.b16 %v261
    %v298 = vunpack.c.l.b16 %v262
    %v299 = vunpack.c.l.b16 %v263
    %v300 = vunpack.c.l.b16 %v264
    %v301 = vunpack.c.l.b16 %v265
    %v302 = vunpack.c.l.b16 %v266
    %v303 = vunpack.c.l.b16 %v267
    %v304 = vunpack.c.l.b16 %v268
    %v305 = vunpack.c.l.b16 %v269
    %v306 = vunpack.c.l.b16 %v270
    %v307 = vunpack.c.l.b16 %v271
    %v308 = vunpack.c.l.b16 %v272
    %v309 = vunpack.c.l.b16 %v273
    %v310 = vunpack.c.l.b16 %v274
    %v311 = vunpack.c.l.b16 %v275
    %v312 = vunpack.c.l.b16 %v276
    %v313 = vpack.c.b16 %v298, %v297
    %v314 = vpack.c.b16 %v300, %v299
    %v315 = vpack.c.b16 %v302, %v301
    %v316 = vpack.c.b16 %v304, %v303
    %v317 = vpack.c.b16 %v306, %v305
    %v318 = vpack.c.b16 %v308, %v307
    %v319 = vpack.c.b16 %v310, %v309
    %v320 = vpack.c.b16 %v312, %v311
    %329 = vmatprep.subr.bf16.mxu0 0
    %330 = vmatpush1.bf16.msra.mxu0 %v320
    %331 = vmatprep.subr.bf16.mxu0 0
    %332 = vmatpush1.bf16.msra.mxu0 %v319
    %333 = vmatprep.subr.bf16.mxu0 0
    %334 = vmatpush1.bf16.msra.mxu0 %v318
    %335 = vmatprep.subr.bf16.mxu0 0
    %336 = vmatpush1.bf16.msra.mxu0 %v317
    %337 = vmatprep.subr.bf16.mxu0 0
    %338 = vmatpush1.bf16.msra.mxu0 %v316
    %339 = vmatprep.subr.bf16.mxu0 0
    %340 = vmatpush1.bf16.msra.mxu0 %v315
    %341 = vmatprep.subr.bf16.mxu0 0
    %342 = vmatpush1.bf16.msra.mxu0 %v314
    %343 = vmatprep.subr.bf16.mxu0 0
    %344 = vmatpush1.bf16.msra.mxu0 %v313
    %345 = vmatprep.subr.bf16.mxu0 0
    %346 = vmatpush2.bf16.msra.mxu0 0
    %347 = vmatprep.subr.bf16.mxu0 0
    %348 = vmatpush2.bf16.msra.mxu0 0
    %349 = vmatprep.subr.bf16.mxu0 0
    %350 = vmatpush2.bf16.msra.mxu0 0
    %351 = vmatprep.subr.bf16.mxu0 0
    %352 = vmatpush2.bf16.msra.mxu0 0
    %353 = vmatprep.subr.bf16.mxu0 0
    %354 = vmatpush2.bf16.msra.mxu0 0
    %355 = vmatprep.subr.bf16.mxu0 0
    %356 = vmatpush2.bf16.msra.mxu0 0
    %357 = vmatprep.subr.bf16.mxu0 0
    %358 = vmatpush2.bf16.msra.mxu0 0
    %359 = vmatprep.subr.bf16.mxu0 0
    %360 = vmatpush2.bf16.msra.mxu0 0
    %361 = vmatprep.mubr.bf16.mxu0 0
    %362 = vmatmul.mubr.bf16.gmra.mxu0 %v260
    %v363 = vpop.f32.mrf.mxu0
    %v364 = vadd.f32 %v280, %v363
    %v365 = vpop.f32.mrf.mxu0
    %v366 = vpop.f32.mrf.mxu0
    %v367 = vpop.f32.mrf.mxu0
    %368 = vdwg.mxu0
    %s369 = scalar_lea.vmem [#allocation2], 192
    %v370 = vld [vmem:[%s369] sm:$0xf]
    %v371 = vld [vmem:[%s369 + $0x4] sm:$0xf]
    %v372 = vld [vmem:[%s369 + $0x8] sm:$0xf]
    %v373 = vld [vmem:[%s369 + $0xc] sm:$0xf]
    %v374 = vld [vmem:[%s369 + $0x10] sm:$0xf]
    %v375 = vld [vmem:[%s369 + $0x14] sm:$0xf]
    %v376 = vld [vmem:[%s369 + $0x18] sm:$0xf]
    %v377 = vld [vmem:[%s369 + $0x1c] sm:$0xf]
    %v378 = vld [vmem:[%s369 + $0x20] sm:$0xf]
    %v379 = vld [vmem:[%s369 + $0x24] sm:$0xf]
    %v380 = vld [vmem:[%s369 + $0x28] sm:$0xf]
    %v381 = vld [vmem:[%s369 + $0x2c] sm:$0xf]
    %v382 = vld [vmem:[%s369 + $0x30] sm:$0xf]
    %v383 = vld [vmem:[%s369 + $0x34] sm:$0xf]
    %v384 = vld [vmem:[%s369 + $0x38] sm:$0xf]
    %v385 = vld [vmem:[%s369 + $0x3c] sm:$0xf]
    %v386 = vpack.c.bf16 %v364, %v364
    %v403 = vunpack.c.l.b16 %v370
    %v404 = vunpack.c.l.b16 %v371
    %v405 = vunpack.c.l.b16 %v372
    %v406 = vunpack.c.l.b16 %v373
    %v407 = vunpack.c.l.b16 %v374
    %v408 = vunpack.c.l.b16 %v375
    %v409 = vunpack.c.l.b16 %v376
    %v410 = vunpack.c.l.b16 %v377
    %v411 = vunpack.c.l.b16 %v378
    %v412 = vunpack.c.l.b16 %v379
    %v413 = vunpack.c.l.b16 %v380
    %v414 = vunpack.c.l.b16 %v381
    %v415 = vunpack.c.l.b16 %v382
    %v416 = vunpack.c.l.b16 %v383
    %v417 = vunpack.c.l.b16 %v384
    %v418 = vunpack.c.l.b16 %v385
    %v419 = vpack.c.b16 %v404, %v403
    %v420 = vpack.c.b16 %v406, %v405
    %v421 = vpack.c.b16 %v408, %v407
    %v422 = vpack.c.b16 %v410, %v409
    %v423 = vpack.c.b16 %v412, %v411
    %v424 = vpack.c.b16 %v414, %v413
    %v425 = vpack.c.b16 %v416, %v415
    %v426 = vpack.c.b16 %v418, %v417
    %435 = vmatprep.subr.bf16.mxu0 0
    %436 = vmatpush1.bf16.msra.mxu0 %v426
    %437 = vmatprep.subr.bf16.mxu0 0
    %438 = vmatpush1.bf16.msra.mxu0 %v425
    %439 = vmatprep.subr.bf16.mxu0 0
    %440 = vmatpush1.bf16.msra.mxu0 %v424
    %441 = vmatprep.subr.bf16.mxu0 0
    %442 = vmatpush1.bf16.msra.mxu0 %v423
    %443 = vmatprep.subr.bf16.mxu0 0
    %444 = vmatpush1.bf16.msra.mxu0 %v422
    %445 = vmatprep.subr.bf16.mxu0 0
    %446 = vmatpush1.bf16.msra.mxu0 %v421
    %447 = vmatprep.subr.bf16.mxu0 0
    %448 = vmatpush1.bf16.msra.mxu0 %v420
    %449 = vmatprep.subr.bf16.mxu0 0
    %450 = vmatpush1.bf16.msra.mxu0 %v419
    %451 = vmatprep.subr.bf16.mxu0 0
    %452 = vmatpush2.bf16.msra.mxu0 0
    %453 = vmatprep.subr.bf16.mxu0 0
    %454 = vmatpush2.bf16.msra.mxu0 0
    %455 = vmatprep.subr.bf16.mxu0 0
    %456 = vmatpush2.bf16.msra.mxu0 0
    %457 = vmatprep.subr.bf16.mxu0 0
    %458 = vmatpush2.bf16.msra.mxu0 0
    %459 = vmatprep.subr.bf16.mxu0 0
    %460 = vmatpush2.bf16.msra.mxu0 0
    %461 = vmatprep.subr.bf16.mxu0 0
    %462 = vmatpush2.bf16.msra.mxu0 0
    %463 = vmatprep.subr.bf16.mxu0 0
    %464 = vmatpush2.bf16.msra.mxu0 0
    %465 = vmatprep.subr.bf16.mxu0 0
    %466 = vmatpush2.bf16.msra.mxu0 0
    %467 = vmatprep.mubr.bf16.mxu0 0
    %468 = vmatmul.mubr.bf16.gmra.mxu0 %v386
    %v469 = vpop.f32.mrf.mxu0
    %v470 = vadd.f32 0.0, %v469
    %v471 = vpop.f32.mrf.mxu0
    %v472 = vpop.f32.mrf.mxu0
    %v473 = vpop.f32.mrf.mxu0
    %474 = vdwg.mxu0
    %v475 = vmul.f32 %v470, 0.015625
    %v476 = vsub.f32 %v364, %v475
    %v477 = vmul.f32 %v476, %v476
    %v478 = vpack.c.bf16 %v477, %v477
    %479 = vmatprep.subr.bf16.mxu0 0
    %480 = vmatpush1.bf16.msra.mxu0 %v426
    %481 = vmatprep.subr.bf16.mxu0 0
    %482 = vmatpush1.bf16.msra.mxu0 %v425
    %483 = vmatprep.subr.bf16.mxu0 0
    %484 = vmatpush1.bf16.msra.mxu0 %v424
    %485 = vmatprep.subr.bf16.mxu0 0
    %486 = vmatpush1.bf16.msra.mxu0 %v423
    %487 = vmatprep.subr.bf16.mxu0 0
    %488 = vmatpush1.bf16.msra.mxu0 %v422
    %489 = vmatprep.subr.bf16.mxu0 0
    %490 = vmatpush1.bf16.msra.mxu0 %v421
    %491 = vmatprep.subr.bf16.mxu0 0
    %492 = vmatpush1.bf16.msra.mxu0 %v420
    %493 = vmatprep.subr.bf16.mxu0 0
    %494 = vmatpush1.bf16.msra.mxu0 %v419
    %495 = vmatprep.subr.bf16.mxu0 0
    %496 = vmatpush2.bf16.msra.mxu0 0
    %497 = vmatprep.subr.bf16.mxu0 0
    %498 = vmatpush2.bf16.msra.mxu0 0
    %499 = vmatprep.subr.bf16.mxu0 0
    %500 = vmatpush2.bf16.msra.mxu0 0
    %501 = vmatprep.subr.bf16.mxu0 0
    %502 = vmatpush2.bf16.msra.mxu0 0
    %503 = vmatprep.subr.bf16.mxu0 0
    %504 = vmatpush2.bf16.msra.mxu0 0
    %505 = vmatprep.subr.bf16.mxu0 0
    %506 = vmatpush2.bf16.msra.mxu0 0
    %507 = vmatprep.subr.bf16.mxu0 0
    %508 = vmatpush2.bf16.msra.mxu0 0
    %509 = vmatprep.subr.bf16.mxu0 0
    %510 = vmatpush2.bf16.msra.mxu0 0
    %511 = vmatprep.mubr.bf16.mxu0 0
    %512 = vmatmul.mubr.bf16.gmra.mxu0 %v478
    %v513 = vpop.f32.mrf.mxu0
    %v514 = vadd.f32 0.0, %v513
    %v515 = vpop.f32.mrf.mxu0
    %v516 = vpop.f32.mrf.mxu0
    %v517 = vpop.f32.mrf.mxu0
    %518 = vdwg.mxu0
    %v519 = vmul.f32 %v514, 0.015625
    %v520 = vadd.f32 %v519, 1e-05
    %v521 = vrsqrt.pop %v520
    %v522 = vmul.f32 %v476, %v521
    %v523 = vlaneseq
    %v524 = vshrl.u32 %v523, 7
    %v525 = vsub.s32 4, %v524
    %v526 = vrot.slane %v35, %v525
    %v527 = vmul.f32 %v522, %v526
    %v528 = vlaneseq
    %v529 = vshrl.u32 %v528, 7
    %v530 = vsub.s32 5, %v529
    %v531 = vrot.slane %v35, %v530
    %v532 = vadd.f32 %v527, %v531
    %v533 = vmax.f32 %v532, 0.0
    %v534 = vpack.c.bf16 %v533, %v533
    %s535 = scalar_lea.vmem [#allocation2], 64
    %v536 = vld [vmem:[%s535] sm:$0xf]
    %v537 = vld [vmem:[%s535 + $0x4] sm:$0xf]
    %v538 = vld [vmem:[%s535 + $0x8] sm:$0xf]
    %v539 = vld [vmem:[%s535 + $0xc] sm:$0xf]
    %v540 = vld [vmem:[%s535 + $0x10] sm:$0xf]
    %v541 = vld [vmem:[%s535 + $0x14] sm:$0xf]
    %v542 = vld [vmem:[%s535 + $0x18] sm:$0xf]
    %v543 = vld [vmem:[%s535 + $0x1c] sm:$0xf]
    %v544 = vld [vmem:[%s535 + $0x20] sm:$0xf]
    %v545 = vld [vmem:[%s535 + $0x24] sm:$0xf]
    %v546 = vld [vmem:[%s535 + $0x28] sm:$0xf]
    %v547 = vld [vmem:[%s535 + $0x2c] sm:$0xf]
    %v548 = vld [vmem:[%s535 + $0x30] sm:$0xf]
    %v549 = vld [vmem:[%s535 + $0x34] sm:$0xf]
    %v550 = vld [vmem:[%s535 + $0x38] sm:$0xf]
    %v551 = vld [vmem:[%s535 + $0x3c] sm:$0xf]
    %v552 = vlaneseq
    %v553 = vshrl.u32 %v552, 7
    %v554 = vsub.s32 6, %v553
    %v555 = vrot.slane %v35, %v554
    %v572 = vunpack.c.l.b16 %v536
    %v573 = vunpack.c.l.b16 %v537
    %v574 = vunpack.c.l.b16 %v538
    %v575 = vunpack.c.l.b16 %v539
    %v576 = vunpack.c.l.b16 %v540
    %v577 = vunpack.c.l.b16 %v541
    %v578 = vunpack.c.l.b16 %v542
    %v579 = vunpack.c.l.b16 %v543
    %v580 = vunpack.c.l.b16 %v544
    %v581 = vunpack.c.l.b16 %v545
    %v582 = vunpack.c.l.b16 %v546
    %v583 = vunpack.c.l.b16 %v547
    %v584 = vunpack.c.l.b16 %v548
    %v585 = vunpack.c.l.b16 %v549
    %v586 = vunpack.c.l.b16 %v550
    %v587 = vunpack.c.l.b16 %v551
    %v588 = vpack.c.b16 %v573, %v572
    %v589 = vpack.c.b16 %v575, %v574
    %v590 = vpack.c.b16 %v577, %v576
    %v591 = vpack.c.b16 %v579, %v578
    %v592 = vpack.c.b16 %v581, %v580
    %v593 = vpack.c.b16 %v583, %v582
    %v594 = vpack.c.b16 %v585, %v584
    %v595 = vpack.c.b16 %v587, %v586
    %604 = vmatprep.subr.bf16.mxu0 0
    %605 = vmatpush1.bf16.msra.mxu0 %v595
    %606 = vmatprep.subr.bf16.mxu0 0
    %607 = vmatpush1.bf16.msra.mxu0 %v594
    %608 = vmatprep.subr.bf16.mxu0 0
    %609 = vmatpush1.bf16.msra.mxu0 %v593
    %610 = vmatprep.subr.bf16.mxu0 0
    %611 = vmatpush1.bf16.msra.mxu0 %v592
    %612 = vmatprep.subr.bf16.mxu0 0
    %613 = vmatpush1.bf16.msra.mxu0 %v591
    %614 = vmatprep.subr.bf16.mxu0 0
    %615 = vmatpush1.bf16.msra.mxu0 %v590
    %616 = vmatprep.subr.bf16.mxu0 0
    %617 = vmatpush1.bf16.msra.mxu0 %v589
    %618 = vmatprep.subr.bf16.mxu0 0
    %619 = vmatpush1.bf16.msra.mxu0 %v588
    %620 = vmatprep.subr.bf16.mxu0 0
    %621 = vmatpush2.bf16.msra.mxu0 0
    %622 = vmatprep.subr.bf16.mxu0 0
    %623 = vmatpush2.bf16.msra.mxu0 0
    %624 = vmatprep.subr.bf16.mxu0 0
    %625 = vmatpush2.bf16.msra.mxu0 0
    %626 = vmatprep.subr.bf16.mxu0 0
    %627 = vmatpush2.bf16.msra.mxu0 0
    %628 = vmatprep.subr.bf16.mxu0 0
    %629 = vmatpush2.bf16.msra.mxu0 0
    %630 = vmatprep.subr.bf16.mxu0 0
    %631 = vmatpush2.bf16.msra.mxu0 0
    %632 = vmatprep.subr.bf16.mxu0 0
    %633 = vmatpush2.bf16.msra.mxu0 0
    %634 = vmatprep.subr.bf16.mxu0 0
    %635 = vmatpush2.bf16.msra.mxu0 0
    %636 = vmatprep.mubr.bf16.mxu0 0
    %637 = vmatmul.mubr.bf16.gmra.mxu0 %v534
    %v638 = vpop.f32.mrf.mxu0
    %v639 = vadd.f32 %v555, %v638
    %v640 = vpop.f32.mrf.mxu0
    %v641 = vpop.f32.mrf.mxu0
    %v642 = vpop.f32.mrf.mxu0
    %643 = vdwg.mxu0
    %s644 = scalar_lea.vmem [#allocation2], 256
    %v645 = vld [vmem:[%s644] sm:$0xf]
    %v646 = vld [vmem:[%s644 + $0x4] sm:$0xf]
    %v647 = vld [vmem:[%s644 + $0x8] sm:$0xf]
    %v648 = vld [vmem:[%s644 + $0xc] sm:$0xf]
    %v649 = vld [vmem:[%s644 + $0x10] sm:$0xf]
    %v650 = vld [vmem:[%s644 + $0x14] sm:$0xf]
    %v651 = vld [vmem:[%s644 + $0x18] sm:$0xf]
    %v652 = vld [vmem:[%s644 + $0x1c] sm:$0xf]
    %v653 = vld [vmem:[%s644 + $0x20] sm:$0xf]
    %v654 = vld [vmem:[%s644 + $0x24] sm:$0xf]
    %v655 = vld [vmem:[%s644 + $0x28] sm:$0xf]
    %v656 = vld [vmem:[%s644 + $0x2c] sm:$0xf]
    %v657 = vld [vmem:[%s644 + $0x30] sm:$0xf]
    %v658 = vld [vmem:[%s644 + $0x34] sm:$0xf]
    %v659 = vld [vmem:[%s644 + $0x38] sm:$0xf]
    %v660 = vld [vmem:[%s644 + $0x3c] sm:$0xf]
    %v661 = vpack.c.bf16 %v639, %v639
    %v678 = vunpack.c.l.b16 %v645
    %v679 = vunpack.c.l.b16 %v646
    %v680 = vunpack.c.l.b16 %v647
    %v681 = vunpack.c.l.b16 %v648
    %v682 = vunpack.c.l.b16 %v649
    %v683 = vunpack.c.l.b16 %v650
    %v684 = vunpack.c.l.b16 %v651
    %v685 = vunpack.c.l.b16 %v652
    %v686 = vunpack.c.l.b16 %v653
    %v687 = vunpack.c.l.b16 %v654
    %v688 = vunpack.c.l.b16 %v655
    %v689 = vunpack.c.l.b16 %v656
    %v690 = vunpack.c.l.b16 %v657
    %v691 = vunpack.c.l.b16 %v658
    %v692 = vunpack.c.l.b16 %v659
    %v693 = vunpack.c.l.b16 %v660
    %v694 = vpack.c.b16 %v679, %v678
    %v695 = vpack.c.b16 %v681, %v680
    %v696 = vpack.c.b16 %v683, %v682
    %v697 = vpack.c.b16 %v685, %v684
    %v698 = vpack.c.b16 %v687, %v686
    %v699 = vpack.c.b16 %v689, %v688
    %v700 = vpack.c.b16 %v691, %v690
    %v701 = vpack.c.b16 %v693, %v692
    %710 = vmatprep.subr.bf16.mxu0 0
    %711 = vmatpush1.bf16.msra.mxu0 %v701
    %712 = vmatprep.subr.bf16.mxu0 0
    %713 = vmatpush1.bf16.msra.mxu0 %v700
    %714 = vmatprep.subr.bf16.mxu0 0
    %715 = vmatpush1.bf16.msra.mxu0 %v699
    %716 = vmatprep.subr.bf16.mxu0 0
    %717 = vmatpush1.bf16.msra.mxu0 %v698
    %718 = vmatprep.subr.bf16.mxu0 0
    %719 = vmatpush1.bf16.msra.mxu0 %v697
    %720 = vmatprep.subr.bf16.mxu0 0
    %721 = vmatpush1.bf16.msra.mxu0 %v696
    %722 = vmatprep.subr.bf16.mxu0 0
    %723 = vmatpush1.bf16.msra.mxu0 %v695
    %724 = vmatprep.subr.bf16.mxu0 0
    %725 = vmatpush1.bf16.msra.mxu0 %v694
    %726 = vmatprep.subr.bf16.mxu0 0
    %727 = vmatpush2.bf16.msra.mxu0 0
    %728 = vmatprep.subr.bf16.mxu0 0
    %729 = vmatpush2.bf16.msra.mxu0 0
    %730 = vmatprep.subr.bf16.mxu0 0
    %731 = vmatpush2.bf16.msra.mxu0 0
    %732 = vmatprep.subr.bf16.mxu0 0
    %733 = vmatpush2.bf16.msra.mxu0 0
    %734 = vmatprep.subr.bf16.mxu0 0
    %735 = vmatpush2.bf16.msra.mxu0 0
    %736 = vmatprep.subr.bf16.mxu0 0
    %737 = vmatpush2.bf16.msra.mxu0 0
    %738 = vmatprep.subr.bf16.mxu0 0
    %739 = vmatpush2.bf16.msra.mxu0 0
    %740 = vmatprep.subr.bf16.mxu0 0
    %741 = vmatpush2.bf16.msra.mxu0 0
    %742 = vmatprep.mubr.bf16.mxu0 0
    %743 = vmatmul.mubr.bf16.gmra.mxu0 %v661
    %v744 = vpop.f32.mrf.mxu0
    %v745 = vadd.f32 0.0, %v744
    %v746 = vpop.f32.mrf.mxu0
    %v747 = vpop.f32.mrf.mxu0
    %v748 = vpop.f32.mrf.mxu0
    %749 = vdwg.mxu0
    %v750 = vmul.f32 %v745, 0.03125
    %v751 = vsub.f32 %v639, %v750
    %v752 = vmul.f32 %v751, %v751
    %v753 = vpack.c.bf16 %v752, %v752
    %754 = vmatprep.subr.bf16.mxu0 0
    %755 = vmatpush1.bf16.msra.mxu0 %v701
    %756 = vmatprep.subr.bf16.mxu0 0
    %757 = vmatpush1.bf16.msra.mxu0 %v700
    %758 = vmatprep.subr.bf16.mxu0 0
    %759 = vmatpush1.bf16.msra.mxu0 %v699
    %760 = vmatprep.subr.bf16.mxu0 0
    %761 = vmatpush1.bf16.msra.mxu0 %v698
    %762 = vmatprep.subr.bf16.mxu0 0
    %763 = vmatpush1.bf16.msra.mxu0 %v697
    %764 = vmatprep.subr.bf16.mxu0 0
    %765 = vmatpush1.bf16.msra.mxu0 %v696
    %766 = vmatprep.subr.bf16.mxu0 0
    %767 = vmatpush1.bf16.msra.mxu0 %v695
    %768 = vmatprep.subr.bf16.mxu0 0
    %769 = vmatpush1.bf16.msra.mxu0 %v694
    %770 = vmatprep.subr.bf16.mxu0 0
    %771 = vmatpush2.bf16.msra.mxu0 0
    %772 = vmatprep.subr.bf16.mxu0 0
    %773 = vmatpush2.bf16.msra.mxu0 0
    %774 = vmatprep.subr.bf16.mxu0 0
    %775 = vmatpush2.bf16.msra.mxu0 0
    %776 = vmatprep.subr.bf16.mxu0 0
    %777 = vmatpush2.bf16.msra.mxu0 0
    %778 = vmatprep.subr.bf16.mxu0 0
    %779 = vmatpush2.bf16.msra.mxu0 0
    %780 = vmatprep.subr.bf16.mxu0 0
    %781 = vmatpush2.bf16.msra.mxu0 0
    %782 = vmatprep.subr.bf16.mxu0 0
    %783 = vmatpush2.bf16.msra.mxu0 0
    %784 = vmatprep.subr.bf16.mxu0 0
    %785 = vmatpush2.bf16.msra.mxu0 0
    %786 = vmatprep.mubr.bf16.mxu0 0
    %787 = vmatmul.mubr.bf16.gmra.mxu0 %v753
    %v788 = vpop.f32.mrf.mxu0
    %v789 = vadd.f32 0.0, %v788
    %v790 = vpop.f32.mrf.mxu0
    %v791 = vpop.f32.mrf.mxu0
    %v792 = vpop.f32.mrf.mxu0
    %793 = vdwg.mxu0
    %v794 = vmul.f32 %v789, 0.03125
    %v795 = vadd.f32 %v794, 1e-05
    %v796 = vrsqrt.pop %v795
    %v797 = vmul.f32 %v751, %v796
    %v798 = vlaneseq
    %v799 = vshrl.u32 %v798, 7
    %v800 = vsub.s32 7, %v799
    %v801 = vrot.slane %v35, %v800
    %v802 = vmul.f32 %v797, %v801
    %v803 = vlaneseq
    %v804 = vshrl.u32 %v803, 7
    %v805 = vsub.s32 0, %v804
    %v806 = vrot.slane %v36, %v805
    %v807 = vadd.f32 %v802, %v806
    %v808 = vmax.f32 %v807, 0.0
    %v809 = vpack.c.bf16 %v808, %v808
    %v810 = vld [vmem:[%s3] sm:$0xf]
    %v811 = vld [vmem:[%s3 + $0x4] sm:$0xf]
    %v812 = vld [vmem:[%s3 + $0x8] sm:$0xf]
    %v813 = vld [vmem:[%s3 + $0xc] sm:$0xf]
    %v814 = vld [vmem:[%s3 + $0x10] sm:$0xf]
    %v815 = vld [vmem:[%s3 + $0x14] sm:$0xf]
    %v816 = vld [vmem:[%s3 + $0x18] sm:$0xf]
    %v817 = vld [vmem:[%s3 + $0x1c] sm:$0xf]
    %v818 = vld [vmem:[%s3 + $0x20] sm:$0xf]
    %v819 = vld [vmem:[%s3 + $0x24] sm:$0xf]
    %v820 = vld [vmem:[%s3 + $0x28] sm:$0xf]
    %v821 = vld [vmem:[%s3 + $0x2c] sm:$0xf]
    %v822 = vld [vmem:[%s3 + $0x30] sm:$0xf]
    %v823 = vld [vmem:[%s3 + $0x34] sm:$0xf]
    %v824 = vld [vmem:[%s3 + $0x38] sm:$0xf]
    %v825 = vld [vmem:[%s3 + $0x3c] sm:$0xf]
    %v842 = vunpack.c.l.b16 %v810
    %v843 = vunpack.c.l.b16 %v811
    %v844 = vunpack.c.l.b16 %v812
    %v845 = vunpack.c.l.b16 %v813
    %v846 = vunpack.c.l.b16 %v814
    %v847 = vunpack.c.l.b16 %v815
    %v848 = vunpack.c.l.b16 %v816
    %v849 = vunpack.c.l.b16 %v817
    %v850 = vunpack.c.l.b16 %v818
    %v851 = vunpack.c.l.b16 %v819
    %v852 = vunpack.c.l.b16 %v820
    %v853 = vunpack.c.l.b16 %v821
    %v854 = vunpack.c.l.b16 %v822
    %v855 = vunpack.c.l.b16 %v823
    %v856 = vunpack.c.l.b16 %v824
    %v857 = vunpack.c.l.b16 %v825
    %v858 = vpack.c.b16 %v843, %v842
    %v859 = vpack.c.b16 %v845, %v844
    %v860 = vpack.c.b16 %v847, %v846
    %v861 = vpack.c.b16 %v849, %v848
    %v862 = vpack.c.b16 %v851, %v850
    %v863 = vpack.c.b16 %v853, %v852
    %v864 = vpack.c.b16 %v855, %v854
    %v865 = vpack.c.b16 %v857, %v856
    %874 = vmatprep.subr.bf16.mxu0 0
    %875 = vmatpush1.bf16.msra.mxu0 %v865
    %876 = vmatprep.subr.bf16.mxu0 0
    %877 = vmatpush1.bf16.msra.mxu0 %v864
    %878 = vmatprep.subr.bf16.mxu0 0
    %879 = vmatpush1.bf16.msra.mxu0 %v863
    %880 = vmatprep.subr.bf16.mxu0 0
    %881 = vmatpush1.bf16.msra.mxu0 %v862
    %882 = vmatprep.subr.bf16.mxu0 0
    %883 = vmatpush1.bf16.msra.mxu0 %v861
    %884 = vmatprep.subr.bf16.mxu0 0
    %885 = vmatpush1.bf16.msra.mxu0 %v860
    %886 = vmatprep.subr.bf16.mxu0 0
    %887 = vmatpush1.bf16.msra.mxu0 %v859
    %888 = vmatprep.subr.bf16.mxu0 0
    %889 = vmatpush1.bf16.msra.mxu0 %v858
    %890 = vmatprep.subr.bf16.mxu0 0
    %891 = vmatpush2.bf16.msra.mxu0 0
    %892 = vmatprep.subr.bf16.mxu0 0
    %893 = vmatpush2.bf16.msra.mxu0 0
    %894 = vmatprep.subr.bf16.mxu0 0
    %895 = vmatpush2.bf16.msra.mxu0 0
    %896 = vmatprep.subr.bf16.mxu0 0
    %897 = vmatpush2.bf16.msra.mxu0 0
    %898 = vmatprep.subr.bf16.mxu0 0
    %899 = vmatpush2.bf16.msra.mxu0 0
    %900 = vmatprep.subr.bf16.mxu0 0
    %901 = vmatpush2.bf16.msra.mxu0 0
    %902 = vmatprep.subr.bf16.mxu0 0
    %903 = vmatpush2.bf16.msra.mxu0 0
    %904 = vmatprep.subr.bf16.mxu0 0
    %905 = vmatpush2.bf16.msra.mxu0 0
    %906 = vmatprep.mubr.bf16.mxu0 0
    %907 = vmatmul.mubr.bf16.gmra.mxu0 %v809
    %v908 = vpop.f32.mrf.mxu0
    %v909 = vadd.f32 0.0, %v908
    %v910 = vpop.f32.mrf.mxu0
    %v911 = vpop.f32.mrf.mxu0
    %v912 = vpop.f32.mrf.mxu0
    %913 = vdwg.mxu0
    %vm914 = vcmask 31744
    %915 = vst.msk [vmem:[%s5] sm:$0xff] %vm914, %v909
    // Predicated region
    $region26: #{tpu_custom_call.1} parent=1 // pred_check
      _
    $region27: #{tpu_custom_call.1} parent=1 // pred_check_branch
      %917 = sbr.rel (0) target = $region29
    $region28: #{tpu_custom_call.1} parent=1 // pred_region
      _
    $region29: #{tpu_custom_call.1} parent=1 // pred_fallthru
      _
    // Predicated region
    $region30: #{tpu_custom_call.1} parent=1 // pred_check
      _
    $region31: #{tpu_custom_call.1} parent=1 // pred_check_branch
      %919 = sbr.rel (0) target = $region33
    $region32: #{tpu_custom_call.1} parent=1 // pred_region
      _
    $region33: #{tpu_custom_call.1} parent=1 // pred_fallthru
      _
    %920 = vsyncpa [#allocation3], 1

</llo_original>
